<compile_context>
chip_gen: v6e
topology: v6e:2x2x1
jax: 0.10.0
libtpu: 0.0.40
codegen_flags: <defaults>
</compile_context>

<pallas_src>
import functools

import jax
import jax.numpy as jnp
from jax.experimental import pallas as pl
from jax.experimental.pallas import tpu as pltpu

_LANE = 128
_SUBLANE = 8
_VMEM_LIMIT = 48 * 1024 * 1024


def _round_up(x, m):
    return (x + m - 1) // m * m


def _fold_bn(gamma, beta, mean, var, eps):
    scale = gamma / jnp.sqrt(var + eps)
    shift = beta - mean * scale
    return scale.astype(jnp.float32), shift.astype(jnp.float32)


# ---------------------------------------------------------------------------
# 1x1 conv + BN (+ PReLU) (+ residual) as a fused MXU matmul kernel.
# ---------------------------------------------------------------------------
def _pointwise_kernel(x_ref, w_ref, shift_ref, *rest, apply_prelu, add_residual):
    o_ref = rest[-1]
    extra = rest[:-1]
    y = jnp.dot(x_ref[...], w_ref[...], preferred_element_type=jnp.float32)
    y = y + shift_ref[...]
    i = 0
    if apply_prelu:
        y = jnp.where(y > 0.0, y, y * extra[i][...])
        i += 1
    if add_residual:
        y = y + extra[i][...].astype(jnp.float32)   # bf16 residual, f32 add
        i += 1
    o_ref[...] = y.astype(o_ref.dtype)


def _pointwise_conv_bn(x2d, w_kc, scale, shift, alpha=None, residual2d=None,
                       out_dtype=jnp.bfloat16):
    """x2d: (M, K) bf16 with K UNPADDED; w_kc: (K, C) f32 with C a multiple of 128."""
    M, K = x2d.shape
    C = w_kc.shape[1]

    # Fold the BN scale into the weights once; epilogue is then just "+ shift".
    w_f = (w_kc * scale[None, :]).astype(jnp.bfloat16)
    shift2 = shift.reshape(1, C).astype(jnp.float32)

    # Large M tiles amortize per-step overhead, but keep >=2 grid steps so
    # both TensorCores are fed on megacore parts (v7x).
    n_blk = max(2, -(-M // 1024)) if M > _SUBLANE else 1
    TM = _round_up(-(-M // n_blk), _SUBLANE)
    Mpad = _round_up(M, TM)
    if Mpad != M:
        x2d = jnp.pad(x2d, ((0, Mpad - M), (0, 0)))
        if residual2d is not None:
            residual2d = jnp.pad(residual2d, ((0, Mpad - M), (0, 0)))

    in_specs = [
        pl.BlockSpec((TM, K), lambda i: (i, 0)),    # K = full dim (unpadded)
        pl.BlockSpec((K, C), lambda i: (0, 0)),
        pl.BlockSpec((1, C), lambda i: (0, 0)),
    ]
    args = [x2d, w_f, shift2]
    if alpha is not None:
        in_specs.append(pl.BlockSpec((1, C), lambda i: (0, 0)))
        args.append(alpha.reshape(1, C).astype(jnp.float32))
    if residual2d is not None:
        in_specs.append(pl.BlockSpec((TM, C), lambda i: (i, 0)))
        args.append(residual2d.astype(jnp.bfloat16))

    kernel = functools.partial(_pointwise_kernel,
                               apply_prelu=alpha is not None,
                               add_residual=residual2d is not None)
    nbytes = 2 * (Mpad * K + K * C + Mpad * C)
    if residual2d is not None:
        nbytes += 2 * Mpad * C
    cost = pl.CostEstimate(flops=2 * Mpad * K * C, transcendentals=0,
                           bytes_accessed=nbytes)

    out = pl.pallas_call(
        kernel,
        out_shape=jax.ShapeDtypeStruct((Mpad, C), out_dtype),
        grid=(Mpad // TM,),
        in_specs=in_specs,
        out_specs=pl.BlockSpec((TM, C), lambda i: (i, 0)),
        compiler_params=pltpu.CompilerParams(
            dimension_semantics=("parallel",),
            vmem_limit_bytes=_VMEM_LIMIT),
        cost_estimate=cost,
    )(*args)
    return out[:M] if Mpad != M else out


# ---------------------------------------------------------------------------
# Depthwise kh x kw conv + BN + PReLU as a VPU MAC kernel (channels on lanes).
# ---------------------------------------------------------------------------
def _depthwise_kernel(x_ref, w_ref, shift_ref, alpha_ref, o_ref, *,
                      kh, kw, sh, sw, th, wp, oi_max):
    hb = pl.program_id(2)                 # output-row block index
    cb = o_ref.shape[-1]
    row0 = hb * th
    if th % _SUBLANE == 0:
        row0 = pl.multiple_of(row0, _SUBLANE)

    taps = w_ref[...]                     # (kh*kw, cb) f32, loaded once
    shift = shift_ref[...]                # (1, cb)
    alpha = alpha_ref[...]                # (1, cb)

    # Register-resident accumulator (TH*Wp <= 128 -> <= 16 f32 vregs).
    acc = jnp.zeros((th, wp, cb), jnp.float32)
    for pi in range(sh):                  # static unroll over phase planes
        for pj in range(sw):
            phase = pi * sw + pj
            # One load + one bf16->f32 cast per phase plane; every tap window
            # below is an in-vreg static slice of `rows` (no per-tap vld/cast).
            rows = x_ref[phase, 0, pl.ds(row0, th + oi_max), :, :].astype(
                jnp.float32)
            for i in range(pi, kh, sh):
                oi = i // sh
                for j in range(pj, kw, sw):
                    oj = j // sw
                    win = rows[oi:oi + th, oj:oj + wp, :]
                    acc = acc + win * taps[i * kw + j:i * kw + j + 1, :]
    y = acc + shift
    y = jnp.where(y > 0.0, y, y * alpha)
    o_ref[0] = y.astype(o_ref.dtype)


def _depthwise_conv_bn_prelu(h, w_dw, scale, shift, alpha, kernel_hw, stride,
                             padding):
    """h: (N, H, W, CP) bf16 NHWC with CP a multiple of 128."""
    N, H, W, CP = h.shape
    G = w_dw.shape[0]
    kh, kw = kernel_hw
    sh, sw = stride
    ph, pw = padding
    Hout = (H + 2 * ph - kh) // sh + 1
    Wout = (W + 2 * pw - kw) // sw + 1
    oi_max = (kh - 1) // sh
    oj_max = (kw - 1) // sw

    # Sublane-dense output columns (no masked vst) + vreg-resident accumulator.
    Wp = _round_up(Wout, _SUBLANE)
    TH = min(Hout, max(1, _LANE // Wp))            # TH * Wp <= 128
    Hout_pad = _round_up(Hout, TH)

    # Phase-plane sizes: every tap is a contiguous window of one phase plane.
    Hphase = max(Hout_pad + oi_max, -(-(H + 2 * ph) // sh))
    Wphase = _round_up(max(Wp + oj_max, -(-(W + 2 * pw) // sw)), _SUBLANE)

    xp = jnp.pad(h, ((0, 0),
                     (ph, sh * Hphase - H - ph),
                     (pw, sw * Wphase - W - pw),
                     (0, 0)))
    if sh == 1 and sw == 1:
        phases = xp[None]                          # pad-only: no shuffle pass
    else:
        phases = xp.reshape(N, Hphase, sh, Wphase, sw, CP)
        phases = jnp.transpose(phases, (2, 4, 0, 1, 3, 5))
        phases = phases.reshape(sh * sw, N, Hphase, Wphase, CP)

    # Per-channel taps with the BN scale folded in, flattened so the kernel
    # loads them once.
    w_taps = jnp.transpose(w_dw[:, 0, :, :], (1, 2, 0)) * scale[None, None, :]
    w_taps = jnp.pad(w_taps, ((0, 0), (0, 0), (0, CP - G)))
    w_taps = w_taps.reshape(kh * kw, CP).astype(jnp.float32)
    shift_p = jnp.pad(shift, (0, CP - G)).reshape(1, CP).astype(jnp.float32)
    alpha_p = jnp.pad(alpha, (0, CP - G), constant_values=1.0)
    alpha_p = alpha_p.reshape(1, CP).astype(jnp.float32)

    CB = _LANE if CP % _LANE == 0 else CP
    grid = (N, CP // CB, Hout_pad // TH)

    kfn = functools.partial(_depthwise_kernel, kh=kh, kw=kw, sh=sh, sw=sw,
                            th=TH, wp=Wp, oi_max=oi_max)
    cost = pl.CostEstimate(
        flops=2 * N * Hout_pad * Wp * CP * kh * kw,
        transcendentals=0,
        bytes_accessed=2 * (phases.size + N * Hout_pad * Wp * CP))

    out = pl.pallas_call(
        kfn,
        out_shape=jax.ShapeDtypeStruct((N, Hout_pad, Wp, CP), jnp.bfloat16),
        grid=grid,
        in_specs=[
            pl.BlockSpec((sh * sw, 1, Hphase, Wphase, CB),
                         lambda n, c, hb: (0, n, 0, 0, c)),
            pl.BlockSpec((kh * kw, CB), lambda n, c, hb: (0, c)),
            pl.BlockSpec((1, CB), lambda n, c, hb: (0, c)),
            pl.BlockSpec((1, CB), lambda n, c, hb: (0, c)),
        ],
        out_specs=pl.BlockSpec((1, TH, Wp, CB), lambda n, c, hb: (n, hb, 0, c)),
        compiler_params=pltpu.CompilerParams(
            # hb "arbitrary": megacore splits on N/C so the resident phase
            # image is never duplicated across TensorCores (v7x).
            dimension_semantics=("parallel", "parallel", "arbitrary"),
            vmem_limit_bytes=_VMEM_LIMIT),
        cost_estimate=cost,
    )(phases, w_taps, shift_p, alpha_p)

    if Hout_pad != Hout or Wp != Wout:
        out = out[:, :Hout, :Wout, :]
    return out


# ---------------------------------------------------------------------------
# Depth_Wise forward.
# ---------------------------------------------------------------------------
def depth_wise_forward(x, params, *, kernel=(3, 3), stride=(2, 2),
                       padding=(1, 1), groups=1, residual=False, eps=1e-5):
    """Forward pass of Depth_Wise (eval-mode BatchNorm).  x: (N, Cin, H, W) f32 NCHW."""
    N, Cin, H, W = x.shape
    w1, w_dw, w3 = params["w1"], params["w_dw"], params["w3"]
    G = w1.shape[0]
    Cout = w3.shape[0]
    assert w_dw.shape[0] == G and w3.shape[1] == G and w1.shape[1] == Cin
    assert groups == G

    GP = _round_up(G, _LANE)
    CoutP = _round_up(Cout, _LANE)

    # Single NCHW -> NHWC (+bf16) layout pass.  The K dims of the matmuls stay
    # unpadded; only lane (output-channel) dims are padded to 128.
    x_nhwc = jnp.transpose(x, (0, 2, 3, 1)).astype(jnp.bfloat16)   # (N,H,W,Cin)

    # Stage 1: 1x1 conv (Cin -> G) + BN + PReLU (MXU, K = Cin unpadded).
    s1, b1 = _fold_bn(*params["bn1"], eps)
    w1_kc = jnp.pad(w1.reshape(G, Cin).T.astype(jnp.float32),
                    ((0, 0), (0, GP - G)))
    h = _pointwise_conv_bn(
        x_nhwc.reshape(N * H * W, Cin), w1_kc,
        jnp.pad(s1, (0, GP - G)), jnp.pad(b1, (0, GP - G)),
        alpha=jnp.pad(params["alpha1"].astype(jnp.float32), (0, GP - G),
                      constant_values=1.0))
    h = h.reshape(N, H, W, GP)

    # Stage 2: depthwise kh x kw conv + BN + PReLU (VPU, channels on lanes).
    s2, b2 = _fold_bn(*params["bn2"], eps)
    h = _depthwise_conv_bn_prelu(h, w_dw, s2, b2,
                                 params["alpha2"].astype(jnp.float32),
                                 kernel, stride, padding)
    _, Hout, Wout, _ = h.shape

    # Stage 3: 1x1 conv (G -> Cout) + BN, bf16 residual add fused into epilogue.
    s3, b3 = _fold_bn(*params["bn3"], eps)
    w3_kc = jnp.pad(w3.reshape(Cout, G).T.astype(jnp.float32),
                    ((0, GP - G), (0, CoutP - Cout)))
    res2d = None
    if residual:
        assert Cout == Cin and Hout == H and Wout == W
        res2d = jnp.pad(x_nhwc, ((0, 0), (0, 0), (0, 0), (0, CoutP - Cin)))
        res2d = res2d.reshape(N * H * W, CoutP)       # bf16 shortcut
    out = _pointwise_conv_bn(
        h.reshape(N * Hout * Wout, GP), w3_kc,
        jnp.pad(s3, (0, CoutP - Cout)), jnp.pad(b3, (0, CoutP - Cout)),
        residual2d=res2d, out_dtype=jnp.bfloat16)

    y = out.reshape(N, Hout, Wout, CoutP)[..., :Cout]
    return jnp.transpose(y, (0, 3, 1, 2)).astype(jnp.float32)   # NCHW, f32


# ---------------------------------------------------------------------------
# Pure-JAX reference (f32) and self-test.
# ---------------------------------------------------------------------------
def _reference(x, p, *, kernel, stride, padding, groups, residual, eps=1e-5):
    def bn(y, stats):
        g, b, m, v = stats
        s = g / jnp.sqrt(v + eps)
        return y * s.reshape(1, -1, 1, 1) + (b - m * s).reshape(1, -1, 1, 1)

    def prelu(y, a):
        return jnp.where(y > 0, y, y * a.reshape(1, -1, 1, 1))

    dn = ("NCHW", "OIHW", "NCHW")
    y = jax.lax.conv_general_dilated(x, p["w1"], (1, 1), [(0, 0), (0, 0)],
                                     dimension_numbers=dn)
    y = prelu(bn(y, p["bn1"]), p["alpha1"])
    y = jax.lax.conv_general_dilated(
        y, p["w_dw"], stride,
        [(padding[0], padding[0]), (padding[1], padding[1])],
        dimension_numbers=dn, feature_group_count=groups)
    y = prelu(bn(y, p["bn2"]), p["alpha2"])
    y = jax.lax.conv_general_dilated(y, p["w3"], (1, 1), [(0, 0), (0, 0)],
                                     dimension_numbers=dn)
    y = bn(y, p["bn3"])
    return x + y if residual else y


def _make_params(key, in_c, out_c, groups, kernel):
    kh, kw = kernel
    ks = jax.random.split(key, 8)

    def bn_params(k, c):
        k1, k2, k3, k4 = jax.random.split(k, 4)
        return (1.0 + 0.1 * jax.random.normal(k1, (c,), jnp.float32),
                0.1 * jax.random.normal(k2, (c,), jnp.float32),
                0.1 * jax.random.normal(k3, (c,), jnp.float32),
                1.0 + 0.1 * jax.random.uniform(k4, (c,), jnp.float32))

    return {
        "w1": 0.1 * jax.random.normal(ks[0], (groups, in_c, 1, 1), jnp.float32),
        "bn1": bn_params(ks[1], groups),
        "alpha1": 0.25 + 0.05 * jax.random.normal(ks[2], (groups,), jnp.float32),
        "w_dw": 0.1 * jax.random.normal(ks[3], (groups, 1, kh, kw), jnp.float32),
        "bn2": bn_params(ks[4], groups),
        "alpha2": 0.25 + 0.05 * jax.random.normal(ks[5], (groups,), jnp.float32),
        "w3": 0.1 * jax.random.normal(ks[6], (out_c, groups, 1, 1), jnp.float32),
        "bn3": bn_params(ks[7], out_c),
    }


if __name__ == "__main__":
    key = jax.random.PRNGKey(0)
    k_p1, k_p2, k_x1, k_x2 = jax.random.split(key, 4)

    # Config A: Depth_Wise defaults (3x3 depthwise, stride 2, no residual).
    in_c, out_c, groups = 4, 8, 8
    kernel, stride, padding = (3, 3), (2, 2), (1, 1)
    x = jax.random.normal(k_x1, (2, in_c, 16, 16), jnp.float32)
    p = _make_params(k_p1, in_c, out_c, groups, kernel)
    y = jax.block_until_ready(
        depth_wise_forward(x, p, kernel=kernel, stride=stride, padding=padding,
                           groups=groups, residual=False))
    y_ref = _reference(x, p, kernel=kernel, stride=stride, padding=padding,
                       groups=groups, residual=False)
    assert y.shape == (2, out_c, 8, 8)
    assert jnp.allclose(y, y_ref, atol=2e-2, rtol=2e-2), \
        float(jnp.max(jnp.abs(y - y_ref)))

    # Config B: residual bottleneck (stride 1, in_c == out_c).
    in_c2, out_c2, groups2 = 4, 4, 8
    stride2 = (1, 1)
    x2 = jax.random.normal(k_x2, (2, in_c2, 16, 16), jnp.float32)
    p2 = _make_params(k_p2, in_c2, out_c2, groups2, kernel)
    y2 = jax.block_until_ready(
        depth_wise_forward(x2, p2, kernel=kernel, stride=stride2,
                           padding=padding, groups=groups2, residual=True))
    y2_ref = _reference(x2, p2, kernel=kernel, stride=stride2, padding=padding,
                        groups=groups2, residual=True)
    assert y2.shape == (2, out_c2, 16, 16)
    assert jnp.allclose(y2, y2_ref, atol=2e-2, rtol=2e-2), \
        float(jnp.max(jnp.abs(y2 - y2_ref)))

    print("KERNEL_OK")
</pallas_src>

<mosaic_0001>
module attributes {stable_mosaic.version = 11 : i64} {
  func.func @_pointwise_kernel(%arg0: i32, %arg1: memref<256x4xbf16, #tpu.memory_space<vmem>>, %arg2: memref<4x128xbf16, #tpu.memory_space<vmem>>, %arg3: memref<1x128xf32, #tpu.memory_space<vmem>>, %arg4: memref<1x128xf32, #tpu.memory_space<vmem>>, %arg5: memref<256x128xbf16, #tpu.memory_space<vmem>>) attributes {dimension_semantics = [#tpu.dimension_semantics<parallel>], iteration_bounds = array<i64: 2>, scalar_prefetch = 0 : i64, scratch_operands = 0 : i64, tpu.core_type = #tpu.core_type<tc>, window_params = [{transform_indices = @transform_0, window_bounds = array<i64: 256, 4>}, {pipeline_mode = #tpu.pipeline_mode<synchronous>, transform_indices = @transform_1, window_bounds = array<i64: 4, 128>}, {pipeline_mode = #tpu.pipeline_mode<synchronous>, transform_indices = @transform_2, window_bounds = array<i64: 1, 128>}, {pipeline_mode = #tpu.pipeline_mode<synchronous>, transform_indices = @transform_3, window_bounds = array<i64: 1, 128>}, {transform_indices = @transform_4, window_bounds = array<i64: 256, 128>}]} {
    %c0 = arith.constant 0 : index
    %c0_0 = arith.constant 0 : index
    %0 = vector.load %arg1[%c0, %c0_0] : memref<256x4xbf16, #tpu.memory_space<vmem>>, vector<256x4xbf16>
    %c0_1 = arith.constant 0 : index
    %c0_2 = arith.constant 0 : index
    %1 = vector.load %arg2[%c0_1, %c0_2] : memref<4x128xbf16, #tpu.memory_space<vmem>>, vector<4x128xbf16>
    %cst = arith.constant dense<0.000000e+00> : vector<256x128xf32>
    %2 = tpu.matmul %0, %1, %cst {dimension_numbers = #tpu.dot_dimension_numbers<[1], [0], [0], [1], [0, 0, 1, 1], [], []>} : vector<256x4xbf16>, vector<4x128xbf16>, vector<256x128xf32> -> vector<256x128xf32>
    %c0_3 = arith.constant 0 : index
    %c0_4 = arith.constant 0 : index
    %3 = vector.load %arg3[%c0_3, %c0_4] : memref<1x128xf32, #tpu.memory_space<vmem>>, vector<1x128xf32>
    %4 = vector.broadcast %3 : vector<1x128xf32> to vector<256x128xf32>
    %5 = arith.addf %2, %4 : vector<256x128xf32>
    %cst_5 = arith.constant 0.000000e+00 : f32
    %6 = vector.broadcast %cst_5 : f32 to vector<256x128xf32>
    %7 = arith.cmpf ogt, %5, %6 : vector<256x128xf32>
    %c0_6 = arith.constant 0 : index
    %c0_7 = arith.constant 0 : index
    %8 = vector.load %arg4[%c0_6, %c0_7] : memref<1x128xf32, #tpu.memory_space<vmem>>, vector<1x128xf32>
    %9 = vector.broadcast %8 : vector<1x128xf32> to vector<256x128xf32>
    %10 = arith.mulf %5, %9 : vector<256x128xf32>
    %11 = arith.select %7, %5, %10 : vector<256x128xi1>, vector<256x128xf32>
    %12 = arith.truncf %11 : vector<256x128xf32> to vector<256x128xbf16>
    %c0_8 = arith.constant 0 : index
    %c0_9 = arith.constant 0 : index
    %13 = vector.load %arg5[%c0_8, %c0_9] : memref<256x128xbf16, #tpu.memory_space<vmem>>, vector<256x128xbf16>
    tpu.vector_store %arg5[%c0_8, %c0_9], %12 {strides = array<i32>} : memref<256x128xbf16, #tpu.memory_space<vmem>>, vector<256x128xbf16>,
    return
  }
  func.func @transform_0(%arg0: i32) -> (i32, i32) {
    %c0_i32 = arith.constant 0 : i32
    %c0_i32_0 = arith.constant 0 : i32
    return %arg0, %c0_i32 : i32, i32
  }
  func.func @transform_1(%arg0: i32) -> (i32, i32) {
    %c0_i32 = arith.constant 0 : i32
    %c0_i32_0 = arith.constant 0 : i32
    %c0_i32_1 = arith.constant 0 : i32
    return %c0_i32, %c0_i32_0 : i32, i32
  }
  func.func @transform_2(%arg0: i32) -> (i32, i32) {
    %c0_i32 = arith.constant 0 : i32
    %c0_i32_0 = arith.constant 0 : i32
    %c0_i32_1 = arith.constant 0 : i32
    return %c0_i32, %c0_i32_0 : i32, i32
  }
  func.func @transform_3(%arg0: i32) -> (i32, i32) {
    %c0_i32 = arith.constant 0 : i32
    %c0_i32_0 = arith.constant 0 : i32
    %c0_i32_1 = arith.constant 0 : i32
    return %c0_i32, %c0_i32_0 : i32, i32
  }
  func.func @transform_4(%arg0: i32) -> (i32, i32) {
    %c0_i32 = arith.constant 0 : i32
    %c0_i32_0 = arith.constant 0 : i32
    return %arg0, %c0_i32 : i32, i32
  }
}

</mosaic_0001>

<llo_original>
// kernel: tpu_custom_call.1
$region0: #{tpu_custom_call.1}
  #allocation0 [shape = 'u32[]', space=smem, size = 0x4, offset = 0x4, fixed_abs, tag = 'smem constant byte address 0x4 - core index']
  #allocation1 [shape = 'u32[144,128]{1,0:T(1,128)}', space=vmem, size = 0x12000, scoped, tag = 'internal scratch']
  %s0 = inlined_call_operand.vmem [shape: bf16[512,4], index: 0, kind: input, shape index: {}]
  %s1 = inlined_call_operand.vmem [shape: bf16[4,128], index: 1, kind: input, shape index: {}]
  %s2 = inlined_call_operand.vmem [shape: f32[1,128], index: 2, kind: input, shape index: {}]
  %s3 = inlined_call_operand.vmem [shape: f32[1,128], index: 3, kind: input, shape index: {}]
  %s4 = inlined_call_operand.hbm [shape: bf16[512,128], index: 4, kind: output, shape index: {}]
  %s5 = sld [smem:[#allocation0]]
  $region49: #{tpu_custom_call.1} parent=0
    _
  %s7 = ssub.s32 1, %s5
  %s8 = scalar_select 0, %s7, %s5
  $region1: #{tpu_custom_call.1} parent=0
    #allocation2 [shape = 'u8[131072]{0}', space=vmem, size = 0x20000, scoped, tag = 'output window, operand 0']
    #allocation3 [shape = 's32[2]{0}', space=sflag, size = 0x8, scoped, tag = 'scoped memory for tpu_custom_call.1']
    %9 = vsyncpa [#allocation3], 0
    %s10 = scalar_lea.sflag [#allocation3], 1
    %11 = vsyncpa %s10, 0
    loop: start=0, step=1, limit=4
    $region2: #{tpu_custom_call.1} parent=1 // loop_pre_header
      _
    $region3: #{tpu_custom_call.1} parent=1 // loop_header
      %s13 = sphi 0, %s17
      %p14 = scmp.ge.s32.totalorder %s13, 4
      %s23 = sphi 0, %s25
      %s26 = sphi 0, %s23
      %s27 = sphi 0, %s26
      %s43 = sphi 0, %s27
      %s47 = sphi 0, %s47
      %s49 = sphi 0, %s47
      %s50 = sphi 0, %s49
      %s64 = sphi 0, %s50
      %s68 = sphi 0, %s68
      %s70 = sphi 0, %s68
      %s71 = sphi 0, %s70
      %s85 = sphi 0, %s71
      %s89 = sphi 0, %s89
      %s91 = sphi 0, %s89
      %s92 = sphi 0, %s91
      %s106 = sphi 0, %s92
      %s112 = sphi 0, %s114
      %s115 = sphi 0, %s112
      %s116 = sphi 0, %s115
      %s132 = sphi 0, %s116
    $region4: #{tpu_custom_call.1} parent=1 // loop_header_branch
      %16 = sbr.rel (%p14) target = $region8
    $region5: #{tpu_custom_call.1} parent=1 // loop_body
      %s18 = ssub.s32 %s13, 1
      %s19 = ssub.s32 %s13, 2
      %s20 = sadd.s32 %s13, 1
      %s21 = ssub.s32 %s13, %s20
      %p22 = scmp.eq.s32.totalorder %s21, 0
      %s24 = sadd.s32 %s23, 1
      %s25 = scalar_select %p22, %s23, %s24
      %p28 = pneg %p22
      %p29 = scmp.eq.s32.totalorder %s13, 1
      %p30 = por %p28, %p29
      %p31 = scmp.ne.s32.totalorder %s23, %s26
      %p32 = scmp.eq.s32.totalorder %s13, 0
      %p33 = por %p31, %p32
      %p34 = scmp.ne.s32.totalorder %s23, %s26
      %p35 = scmp.eq.s32.totalorder %s18, 1
      %p36 = por %p34, %p35
      %p37 = scmp.ne.s32.totalorder %s26, %s27
      %p38 = scmp.eq.s32.totalorder %s18, 0
      %p39 = por %p37, %p38
      %p40 = scmp.ne.s32.totalorder %s26, %s27
      %p41 = scmp.eq.s32.totalorder %s19, 1
      %p42 = por %p40, %p41
      %p44 = scmp.ne.s32.totalorder %s27, %s43
      %p45 = scmp.eq.s32.totalorder %s19, 0
      %p46 = por %p44, %p45
      %s48 = sadd.s32 %s47, 1
      %p51 = scmp.eq.s32.totalorder %s13, 1
      %p52 = scmp.ne.s32.totalorder %s47, %s49
      %p53 = scmp.eq.s32.totalorder %s13, 0
      %p54 = por %p52, %p53
      %p55 = scmp.ne.s32.totalorder %s47, %s49
      %p56 = scmp.eq.s32.totalorder %s18, 1
      %p57 = por %p55, %p56
      %p58 = scmp.ne.s32.totalorder %s49, %s50
      %p59 = scmp.eq.s32.totalorder %s18, 0
      %p60 = por %p58, %p59
      %p61 = scmp.ne.s32.totalorder %s49, %s50
      %p62 = scmp.eq.s32.totalorder %s19, 1
      %p63 = por %p61, %p62
      %p65 = scmp.ne.s32.totalorder %s50, %s64
      %p66 = scmp.eq.s32.totalorder %s19, 0
      %p67 = por %p65, %p66
      %s69 = sadd.s32 %s68, 1
      %p72 = scmp.eq.s32.totalorder %s13, 1
      %p73 = scmp.ne.s32.totalorder %s68, %s70
      %p74 = scmp.eq.s32.totalorder %s13, 0
      %p75 = por %p73, %p74
      %p76 = scmp.ne.s32.totalorder %s68, %s70
      %p77 = scmp.eq.s32.totalorder %s18, 1
      %p78 = por %p76, %p77
      %p79 = scmp.ne.s32.totalorder %s70, %s71
      %p80 = scmp.eq.s32.totalorder %s18, 0
      %p81 = por %p79, %p80
      %p82 = scmp.ne.s32.totalorder %s70, %s71
      %p83 = scmp.eq.s32.totalorder %s19, 1
      %p84 = por %p82, %p83
      %p86 = scmp.ne.s32.totalorder %s71, %s85
      %p87 = scmp.eq.s32.totalorder %s19, 0
      %p88 = por %p86, %p87
      %s90 = sadd.s32 %s89, 1
      %p93 = scmp.eq.s32.totalorder %s13, 1
      %p94 = scmp.ne.s32.totalorder %s89, %s91
      %p95 = scmp.eq.s32.totalorder %s13, 0
      %p96 = por %p94, %p95
      %p97 = scmp.ne.s32.totalorder %s89, %s91
      %p98 = scmp.eq.s32.totalorder %s18, 1
      %p99 = por %p97, %p98
      %p100 = scmp.ne.s32.totalorder %s91, %s92
      %p101 = scmp.eq.s32.totalorder %s18, 0
      %p102 = por %p100, %p101
      %p103 = scmp.ne.s32.totalorder %s91, %s92
      %p104 = scmp.eq.s32.totalorder %s19, 1
      %p105 = por %p103, %p104
      %p107 = scmp.ne.s32.totalorder %s92, %s106
      %p108 = scmp.eq.s32.totalorder %s19, 0
      %p109 = por %p107, %p108
      %s110 = ssub.s32 %s13, %s20
      %p111 = scmp.eq.s32.totalorder %s110, 0
      %s113 = sadd.s32 %s112, 1
      %s114 = scalar_select %p111, %s112, %s113
      %p117 = pneg %p111
      %p118 = scmp.eq.s32.totalorder %s13, 1
      %p119 = por %p117, %p118
      %p120 = scmp.ne.s32.totalorder %s112, %s115
      %p121 = scmp.eq.s32.totalorder %s13, 0
      %p122 = por %p120, %p121
      %p123 = scmp.ne.s32.totalorder %s112, %s115
      %p124 = scmp.eq.s32.totalorder %s18, 1
      %p125 = por %p123, %p124
      %p126 = scmp.ne.s32.totalorder %s115, %s116
      %p127 = scmp.eq.s32.totalorder %s18, 0
      %p128 = por %p126, %p127
      %p129 = scmp.ne.s32.totalorder %s115, %s116
      %p130 = scmp.eq.s32.totalorder %s19, 1
      %p131 = por %p129, %p130
      %p133 = scmp.ne.s32.totalorder %s116, %s132
      %p134 = scmp.eq.s32.totalorder %s19, 0
      %p135 = por %p133, %p134
      %p136 = scmp.le.s32.totalorder 1, %s13
      %p137 = scmp.lt.s32.totalorder %s13, 3
      %p138 = pnand %p136, %p137
      %p139 = pneg %p138
      // Predicated region
      $region9: #{tpu_custom_call.1} parent=5 // pred_check
        _
      $region10: #{tpu_custom_call.1} parent=5 // pred_check_branch
        %141 = sbr.rel (%p138) target = $region12
      $region11: #{tpu_custom_call.1} parent=5 // pred_region
        %s142 = ssub.s32 %s13, 1
        // Predicated region
        $region13: #{tpu_custom_call.1} parent=11 // pred_check
          %p143 = pneg %p60
        $region14: #{tpu_custom_call.1} parent=11 // pred_check_branch
          %145 = sbr.rel (%p143) target = $region16
        $region15: #{tpu_custom_call.1} parent=11 // pred_region
          _
        $region16: #{tpu_custom_call.1} parent=11 // pred_fallthru
          _
        // Predicated region
        $region17: #{tpu_custom_call.1} parent=11 // pred_check
          %p146 = pneg %p81
        $region18: #{tpu_custom_call.1} parent=11 // pred_check_branch
          %148 = sbr.rel (%p146) target = $region20
        $region19: #{tpu_custom_call.1} parent=11 // pred_region
          _
        $region20: #{tpu_custom_call.1} parent=11 // pred_fallthru
          _
        // Predicated region
        $region21: #{tpu_custom_call.1} parent=11 // pred_check
          %p149 = pneg %p102
        $region22: #{tpu_custom_call.1} parent=11 // pred_check_branch
          %151 = sbr.rel (%p149) target = $region24
        $region23: #{tpu_custom_call.1} parent=11 // pred_region
          _
        $region24: #{tpu_custom_call.1} parent=11 // pred_fallthru
          _
      $region12: #{tpu_custom_call.1} parent=5 // pred_fallthru
        _
      %p152 = scmp.lt.s32.totalorder %s13, 2
      // Predicated region
      $region25: #{tpu_custom_call.1} parent=5 // pred_check
        %p153 = pneg %p152
      $region26: #{tpu_custom_call.1} parent=5 // pred_check_branch
        %155 = sbr.rel (%p153) target = $region28
      $region27: #{tpu_custom_call.1} parent=5 // pred_region
        // Predicated region
        $region29: #{tpu_custom_call.1} parent=27 // pred_check
          %p156 = pneg %p33
        $region30: #{tpu_custom_call.1} parent=27 // pred_check_branch
          %158 = sbr.rel (%p156) target = $region32
        $region31: #{tpu_custom_call.1} parent=27 // pred_region
          %s159 = smul.u32 32, %s13
          %p160 = scmp.lt.s32.totalorder %s159, 63
          %s161 = scalar_select %p160, %s159, 63
          %s162 = smul.addr %s161, 4
          %s163 = scalar_lea.vmem %s0, %s162
          %s164 = smul.u32 32, %s13
        $region32: #{tpu_custom_call.1} parent=27 // pred_fallthru
          _
      $region28: #{tpu_custom_call.1} parent=5 // pred_fallthru
        _
      %p165 = scmp.le.s32.totalorder 1, %s13
      %p166 = scmp.lt.s32.totalorder %s13, 3
      %p167 = pnand %p165, %p166
      %p168 = pneg %p167
      // Predicated region
      $region33: #{tpu_custom_call.1} parent=5 // pred_check
        _
      $region34: #{tpu_custom_call.1} parent=5 // pred_check_branch
        %170 = sbr.rel (%p167) target = $region36
      $region35: #{tpu_custom_call.1} parent=5 // pred_region
        %s171 = ssub.s32 %s13, 1
        %s172 = smul.u32 32, %s18
        %p173 = scmp.lt.s32.totalorder %s172, 63
        %s174 = scalar_select %p173, %s172, 63
        %s175 = smul.addr %s174, 4
        %s176 = scalar_lea.vmem %s0, %s175
        %p177 = pneg %p39
        %p178 = pneg %p36
        %p179 = pneg %p60
        %p180 = pneg %p57
        %p181 = pneg %p81
        %p182 = pneg %p78
        %p183 = pneg %p102
        %p184 = pneg %p99
        %p185 = pneg %p128
        %p186 = pneg %p125
        %s187 = sand.u32 %s115, 1
        %s188 = scalar_lea.sflag [#allocation3], %s187
        %s189 = sand.u32 %s115, 1
        %s190 = smul.addr %s189, 128
        %s191 = scalar_lea.vmem [#allocation2], %s190
        %s192 = smul.u32 32, %s18
        %p193 = scmp.lt.s32.totalorder %s192, 63
        %s194 = scalar_select %p193, %s192, 63
        %s195 = smul.addr %s194, 4
        %s196 = scalar_lea.vmem %s0, %s195
        %s197 = smul.u32 32, %s18
        %s198 = smul.u32 32, %s18
        %v200 = vld [vmem:[%s196] sm:$0xf]
        %v201 = vld [vmem:[%s196 + $0x4] sm:$0xf]
        %v202 = vld [vmem:[%s196 + $0x8] sm:$0xf]
        %v203 = vld [vmem:[%s196 + $0xc] sm:$0xf]
        %v204 = vld [vmem:[%s196 + $0x10] sm:$0xf]
        %v205 = vld [vmem:[%s196 + $0x14] sm:$0xf]
        %v206 = vld [vmem:[%s196 + $0x18] sm:$0xf]
        %v207 = vld [vmem:[%s196 + $0x1c] sm:$0xf]
        %v208 = vld [vmem:[%s196 + $0x20] sm:$0xf]
        %v209 = vld [vmem:[%s196 + $0x24] sm:$0xf]
        %v210 = vld [vmem:[%s196 + $0x28] sm:$0xf]
        %v211 = vld [vmem:[%s196 + $0x2c] sm:$0xf]
        %v212 = vld [vmem:[%s196 + $0x30] sm:$0xf]
        %v213 = vld [vmem:[%s196 + $0x34] sm:$0xf]
        %v214 = vld [vmem:[%s196 + $0x38] sm:$0xf]
        %v215 = vld [vmem:[%s196 + $0x3c] sm:$0xf]
        %v216 = vld [vmem:[%s196 + $0x40] sm:$0xf]
        %v217 = vld [vmem:[%s196 + $0x44] sm:$0xf]
        %v218 = vld [vmem:[%s196 + $0x48] sm:$0xf]
        %v219 = vld [vmem:[%s196 + $0x4c] sm:$0xf]
        %v220 = vld [vmem:[%s196 + $0x50] sm:$0xf]
        %v221 = vld [vmem:[%s196 + $0x54] sm:$0xf]
        %v222 = vld [vmem:[%s196 + $0x58] sm:$0xf]
        %v223 = vld [vmem:[%s196 + $0x5c] sm:$0xf]
        %v224 = vld [vmem:[%s196 + $0x60] sm:$0xf]
        %v225 = vld [vmem:[%s196 + $0x64] sm:$0xf]
        %v226 = vld [vmem:[%s196 + $0x68] sm:$0xf]
        %v227 = vld [vmem:[%s196 + $0x6c] sm:$0xf]
        %v228 = vld [vmem:[%s196 + $0x70] sm:$0xf]
        %v229 = vld [vmem:[%s196 + $0x74] sm:$0xf]
        %v230 = vld [vmem:[%s196 + $0x78] sm:$0xf]
        %v231 = vld [vmem:[%s196 + $0x7c] sm:$0xf]
        %v232 = vld [vmem:[%s1] sm:$0x3]
        %v233 = vld [vmem:[%s2] sm:$0x1]
        %v235 = vlaneseq
        %v236 = vshrl.u32 %v235, 7
        %v237 = vsub.s32 0, %v236
        %v238 = vrot.slane %v233, %v237
        %v272 = vunpack.c.l.b16 %v200
        %v273 = vunpack.c.l.b16 %v201
        %v274 = vunpack.c.l.b16 %v202
        %v275 = vunpack.c.l.b16 %v203
        %v276 = vunpack.c.l.b16 %v204
        %v277 = vunpack.c.l.b16 %v205
        %v278 = vunpack.c.l.b16 %v206
        %v279 = vunpack.c.l.b16 %v207
        %v280 = vunpack.c.l.b16 %v208
        %v281 = vunpack.c.l.b16 %v209
        %v282 = vunpack.c.l.b16 %v210
        %v283 = vunpack.c.l.b16 %v211
        %v284 = vunpack.c.l.b16 %v212
        %v285 = vunpack.c.l.b16 %v213
        %v286 = vunpack.c.l.b16 %v214
        %v287 = vunpack.c.l.b16 %v215
        %v288 = vunpack.c.l.b16 %v216
        %v289 = vunpack.c.l.b16 %v217
        %v290 = vunpack.c.l.b16 %v218
        %v291 = vunpack.c.l.b16 %v219
        %v292 = vunpack.c.l.b16 %v220
        %v293 = vunpack.c.l.b16 %v221
        %v294 = vunpack.c.l.b16 %v222
        %v295 = vunpack.c.l.b16 %v223
        %v296 = vunpack.c.l.b16 %v224
        %v297 = vunpack.c.l.b16 %v225
        %v298 = vunpack.c.l.b16 %v226
        %v299 = vunpack.c.l.b16 %v227
        %v300 = vunpack.c.l.b16 %v228
        %v301 = vunpack.c.l.b16 %v229
        %v302 = vunpack.c.l.b16 %v230
        %v303 = vunpack.c.l.b16 %v231
        %v304 = vpack.c.b16 %v273, %v272
        %v305 = vpack.c.b16 %v275, %v274
        %v306 = vpack.c.b16 %v277, %v276
        %v307 = vpack.c.b16 %v279, %v278
        %v308 = vpack.c.b16 %v281, %v280
        %v309 = vpack.c.b16 %v283, %v282
        %v310 = vpack.c.b16 %v285, %v284
        %v311 = vpack.c.b16 %v287, %v286
        %v312 = vpack.c.b16 %v289, %v288
        %v313 = vpack.c.b16 %v291, %v290
        %v314 = vpack.c.b16 %v293, %v292
        %v315 = vpack.c.b16 %v295, %v294
        %v316 = vpack.c.b16 %v297, %v296
        %v317 = vpack.c.b16 %v299, %v298
        %v318 = vpack.c.b16 %v301, %v300
        %v319 = vpack.c.b16 %v303, %v302
        %vm320 = vcmask 31744
        %v322 = vsel %vm320, %v304, 0
        %v325 = vsel %vm320, %v305, 0
        %v328 = vsel %vm320, %v306, 0
        %v331 = vsel %vm320, %v307, 0
        %v334 = vsel %vm320, %v308, 0
        %v337 = vsel %vm320, %v309, 0
        %v340 = vsel %vm320, %v310, 0
        %v343 = vsel %vm320, %v311, 0
        %v346 = vsel %vm320, %v312, 0
        %v349 = vsel %vm320, %v313, 0
        %v352 = vsel %vm320, %v314, 0
        %v355 = vsel %vm320, %v315, 0
        %v358 = vsel %vm320, %v316, 0
        %v361 = vsel %vm320, %v317, 0
        %v364 = vsel %vm320, %v318, 0
        %v367 = vsel %vm320, %v319, 0
        %vm369 = vcmask 1041408
        %v371 = vsel %vm369, %v232, 0
        %373 = vmatprep.subr.bf16.mxu0 0
        %374 = vmatpush1.bf16.msra.mxu0 0
        %375 = vmatprep.subr.bf16.mxu0 0
        %376 = vmatpush1.bf16.msra.mxu0 0
        %377 = vmatprep.subr.bf16.mxu0 0
        %378 = vmatpush1.bf16.msra.mxu0 0
        %379 = vmatprep.subr.bf16.mxu0 0
        %380 = vmatpush1.bf16.msra.mxu0 0
        %381 = vmatprep.subr.bf16.mxu0 0
        %382 = vmatpush1.bf16.msra.mxu0 0
        %383 = vmatprep.subr.bf16.mxu0 0
        %384 = vmatpush1.bf16.msra.mxu0 0
        %385 = vmatprep.subr.bf16.mxu0 0
        %386 = vmatpush1.bf16.msra.mxu0 0
        %387 = vmatprep.subr.bf16.mxu0 0
        %388 = vmatpush1.bf16.msra.mxu0 %v371
        %389 = vmatprep.subr.bf16.mxu0 0
        %390 = vmatpush2.bf16.msra.mxu0 0
        %391 = vmatprep.subr.bf16.mxu0 0
        %392 = vmatpush2.bf16.msra.mxu0 0
        %393 = vmatprep.subr.bf16.mxu0 0
        %394 = vmatpush2.bf16.msra.mxu0 0
        %395 = vmatprep.subr.bf16.mxu0 0
        %396 = vmatpush2.bf16.msra.mxu0 0
        %397 = vmatprep.subr.bf16.mxu0 0
        %398 = vmatpush2.bf16.msra.mxu0 0
        %399 = vmatprep.subr.bf16.mxu0 0
        %400 = vmatpush2.bf16.msra.mxu0 0
        %401 = vmatprep.subr.bf16.mxu0 0
        %402 = vmatpush2.bf16.msra.mxu0 0
        %403 = vmatprep.subr.bf16.mxu0 0
        %404 = vmatpush2.bf16.msra.mxu0 0
        %405 = vmatprep.mubr.bf16.mxu0 0
        %406 = vmatmul.mubr.bf16.gmra.mxu0 %v322
        %v407 = vpop.f32.mrf.mxu0
        %v408 = vadd.f32 %v238, %v407
        %v409 = vpop.f32.mrf.mxu0
        %v410 = vpop.f32.mrf.mxu0
        %v411 = vadd.f32 %v238, %v410
        %v412 = vpop.f32.mrf.mxu0
        %413 = vmatprep.mubr.bf16.mxu0 0
        %414 = vmatmul.mubr.bf16.gmra.mxu0 %v325
        %v415 = vpop.f32.mrf.mxu0
        %v416 = vadd.f32 %v238, %v415
        %v417 = vpop.f32.mrf.mxu0
        %v418 = vpop.f32.mrf.mxu0
        %v419 = vadd.f32 %v238, %v418
        %v420 = vpop.f32.mrf.mxu0
        %421 = vmatprep.mubr.bf16.mxu0 0
        %422 = vmatmul.mubr.bf16.gmra.mxu0 %v328
        %v423 = vpop.f32.mrf.mxu0
        %v424 = vadd.f32 %v238, %v423
        %v425 = vpop.f32.mrf.mxu0
        %v426 = vpop.f32.mrf.mxu0
        %v427 = vadd.f32 %v238, %v426
        %v428 = vpop.f32.mrf.mxu0
        %429 = vmatprep.mubr.bf16.mxu0 0
        %430 = vmatmul.mubr.bf16.gmra.mxu0 %v331
        %v431 = vpop.f32.mrf.mxu0
        %v432 = vadd.f32 %v238, %v431
        %v433 = vpop.f32.mrf.mxu0
        %v434 = vpop.f32.mrf.mxu0
        %v435 = vadd.f32 %v238, %v434
        %v436 = vpop.f32.mrf.mxu0
        %437 = vmatprep.mubr.bf16.mxu0 0
        %438 = vmatmul.mubr.bf16.gmra.mxu0 %v334
        %v439 = vpop.f32.mrf.mxu0
        %v440 = vadd.f32 %v238, %v439
        %v441 = vpop.f32.mrf.mxu0
        %v442 = vpop.f32.mrf.mxu0
        %v443 = vadd.f32 %v238, %v442
        %v444 = vpop.f32.mrf.mxu0
        %445 = vmatprep.mubr.bf16.mxu0 0
        %446 = vmatmul.mubr.bf16.gmra.mxu0 %v337
        %v447 = vpop.f32.mrf.mxu0
        %v448 = vadd.f32 %v238, %v447
        %v449 = vpop.f32.mrf.mxu0
        %v450 = vpop.f32.mrf.mxu0
        %v451 = vadd.f32 %v238, %v450
        %v452 = vpop.f32.mrf.mxu0
        %453 = vmatprep.mubr.bf16.mxu0 0
        %454 = vmatmul.mubr.bf16.gmra.mxu0 %v340
        %v455 = vpop.f32.mrf.mxu0
        %v456 = vadd.f32 %v238, %v455
        %v457 = vpop.f32.mrf.mxu0
        %v458 = vpop.f32.mrf.mxu0
        %v459 = vadd.f32 %v238, %v458
        %v460 = vpop.f32.mrf.mxu0
        %461 = vmatprep.mubr.bf16.mxu0 0
        %462 = vmatmul.mubr.bf16.gmra.mxu0 %v343
        %v463 = vpop.f32.mrf.mxu0
        %v464 = vadd.f32 %v238, %v463
        %v465 = vpop.f32.mrf.mxu0
        %v466 = vpop.f32.mrf.mxu0
        %v467 = vadd.f32 %v238, %v466
        %v468 = vpop.f32.mrf.mxu0
        %469 = vmatprep.mubr.bf16.mxu0 0
        %470 = vmatmul.mubr.bf16.gmra.mxu0 %v346
        %v471 = vpop.f32.mrf.mxu0
        %v472 = vadd.f32 %v238, %v471
        %v473 = vpop.f32.mrf.mxu0
        %v474 = vpop.f32.mrf.mxu0
        %v475 = vadd.f32 %v238, %v474
        %v476 = vpop.f32.mrf.mxu0
        %477 = vmatprep.mubr.bf16.mxu0 0
        %478 = vmatmul.mubr.bf16.gmra.mxu0 %v349
        %v479 = vpop.f32.mrf.mxu0
        %v480 = vadd.f32 %v238, %v479
        %v481 = vpop.f32.mrf.mxu0
        %v482 = vpop.f32.mrf.mxu0
        %v483 = vadd.f32 %v238, %v482
        %v484 = vpop.f32.mrf.mxu0
        %485 = vmatprep.mubr.bf16.mxu0 0
        %486 = vmatmul.mubr.bf16.gmra.mxu0 %v352
        %v487 = vpop.f32.mrf.mxu0
        %v488 = vadd.f32 %v238, %v487
        %v489 = vpop.f32.mrf.mxu0
        %v490 = vpop.f32.mrf.mxu0
        %v491 = vadd.f32 %v238, %v490
        %v492 = vpop.f32.mrf.mxu0
        %493 = vmatprep.mubr.bf16.mxu0 0
        %494 = vmatmul.mubr.bf16.gmra.mxu0 %v355
        %v495 = vpop.f32.mrf.mxu0
        %v496 = vadd.f32 %v238, %v495
        %v497 = vpop.f32.mrf.mxu0
        %v498 = vpop.f32.mrf.mxu0
        %v499 = vadd.f32 %v238, %v498
        %v500 = vpop.f32.mrf.mxu0
        %501 = vmatprep.mubr.bf16.mxu0 0
        %502 = vmatmul.mubr.bf16.gmra.mxu0 %v358
        %v503 = vpop.f32.mrf.mxu0
        %v504 = vadd.f32 %v238, %v503
        %v505 = vpop.f32.mrf.mxu0
        %v506 = vpop.f32.mrf.mxu0
        %v507 = vadd.f32 %v238, %v506
        %v508 = vpop.f32.mrf.mxu0
        %509 = vmatprep.mubr.bf16.mxu0 0
        %510 = vmatmul.mubr.bf16.gmra.mxu0 %v361
        %v511 = vpop.f32.mrf.mxu0
        %v512 = vadd.f32 %v238, %v511
        %v513 = vpop.f32.mrf.mxu0
        %v514 = vpop.f32.mrf.mxu0
        %v515 = vadd.f32 %v238, %v514
        %v516 = vpop.f32.mrf.mxu0
        %517 = vmatprep.mubr.bf16.mxu0 0
        %518 = vmatmul.mubr.bf16.gmra.mxu0 %v364
        %v519 = vpop.f32.mrf.mxu0
        %v520 = vadd.f32 %v238, %v519
        %v521 = vpop.f32.mrf.mxu0
        %v522 = vpop.f32.mrf.mxu0
        %v523 = vadd.f32 %v238, %v522
        %v524 = vpop.f32.mrf.mxu0
        %525 = vmatprep.mubr.bf16.mxu0 0
        %526 = vmatmul.mubr.bf16.gmra.mxu0 %v367
        %v527 = vpop.f32.mrf.mxu0
        %v528 = vadd.f32 %v238, %v527
        %v529 = vpop.f32.mrf.mxu0
        %v530 = vpop.f32.mrf.mxu0
        %v531 = vadd.f32 %v238, %v530
        %v532 = vpop.f32.mrf.mxu0
        %533 = vdwg.mxu0
        %vm534 = vcmp.gt.f32.partialorder %v408, 0.0
        %vm535 = vcmp.gt.f32.partialorder %v411, 0.0
        %vm536 = vcmp.gt.f32.partialorder %v416, 0.0
        %vm537 = vcmp.gt.f32.partialorder %v419, 0.0
        %vm538 = vcmp.gt.f32.partialorder %v424, 0.0
        %vm539 = vcmp.gt.f32.partialorder %v427, 0.0
        %vm540 = vcmp.gt.f32.partialorder %v432, 0.0
        %vm541 = vcmp.gt.f32.partialorder %v435, 0.0
        %vm542 = vcmp.gt.f32.partialorder %v440, 0.0
        %vm543 = vcmp.gt.f32.partialorder %v443, 0.0
        %vm544 = vcmp.gt.f32.partialorder %v448, 0.0
        %vm545 = vcmp.gt.f32.partialorder %v451, 0.0
        %vm546 = vcmp.gt.f32.partialorder %v456, 0.0
        %vm547 = vcmp.gt.f32.partialorder %v459, 0.0
        %vm548 = vcmp.gt.f32.partialorder %v464, 0.0
        %vm549 = vcmp.gt.f32.partialorder %v467, 0.0
        %vm550 = vcmp.gt.f32.partialorder %v472, 0.0
        %vm551 = vcmp.gt.f32.partialorder %v475, 0.0
        %vm552 = vcmp.gt.f32.partialorder %v480, 0.0
        %vm553 = vcmp.gt.f32.partialorder %v483, 0.0
        %vm554 = vcmp.gt.f32.partialorder %v488, 0.0
        %vm555 = vcmp.gt.f32.partialorder %v491, 0.0
        %vm556 = vcmp.gt.f32.partialorder %v496, 0.0
        %vm557 = vcmp.gt.f32.partialorder %v499, 0.0
        %vm558 = vcmp.gt.f32.partialorder %v504, 0.0
        %vm559 = vcmp.gt.f32.partialorder %v507, 0.0
        %vm560 = vcmp.gt.f32.partialorder %v512, 0.0
        %vm561 = vcmp.gt.f32.partialorder %v515, 0.0
        %vm562 = vcmp.gt.f32.partialorder %v520, 0.0
        %vm563 = vcmp.gt.f32.partialorder %v523, 0.0
        %vm564 = vcmp.gt.f32.partialorder %v528, 0.0
        %vm565 = vcmp.gt.f32.partialorder %v531, 0.0
        %v566 = vld [vmem:[%s3] sm:$0x1]
        %v568 = vlaneseq
        %v569 = vshrl.u32 %v568, 7
        %v570 = vsub.s32 0, %v569
        %v571 = vrot.slane %v566, %v570
        %v573 = vmul.f32 %v408, %v571
        %v574 = vmul.f32 %v411, %v571
        %v575 = vmul.f32 %v416, %v571
        %v576 = vmul.f32 %v419, %v571
        %v577 = vmul.f32 %v424, %v571
        %v578 = vmul.f32 %v427, %v571
        %v579 = vmul.f32 %v432, %v571
        %v580 = vmul.f32 %v435, %v571
        %v581 = vmul.f32 %v440, %v571
        %v582 = vmul.f32 %v443, %v571
        %v583 = vmul.f32 %v448, %v571
        %v584 = vmul.f32 %v451, %v571
        %v585 = vmul.f32 %v456, %v571
        %v586 = vmul.f32 %v459, %v571
        %v587 = vmul.f32 %v464, %v571
        %v588 = vmul.f32 %v467, %v571
        %v589 = vmul.f32 %v472, %v571
        %v590 = vmul.f32 %v475, %v571
        %v591 = vmul.f32 %v480, %v571
        %v592 = vmul.f32 %v483, %v571
        %v593 = vmul.f32 %v488, %v571
        %v594 = vmul.f32 %v491, %v571
        %v595 = vmul.f32 %v496, %v571
        %v596 = vmul.f32 %v499, %v571
        %v597 = vmul.f32 %v504, %v571
        %v598 = vmul.f32 %v507, %v571
        %v599 = vmul.f32 %v512, %v571
        %v600 = vmul.f32 %v515, %v571
        %v601 = vmul.f32 %v520, %v571
        %v602 = vmul.f32 %v523, %v571
        %v603 = vmul.f32 %v528, %v571
        %v604 = vmul.f32 %v531, %v571
        %v605 = vsel %vm534, %v408, %v573
        %v606 = vsel %vm535, %v411, %v574
        %v607 = vsel %vm536, %v416, %v575
        %v608 = vsel %vm537, %v419, %v576
        %v609 = vsel %vm538, %v424, %v577
        %v610 = vsel %vm539, %v427, %v578
        %v611 = vsel %vm540, %v432, %v579
        %v612 = vsel %vm541, %v435, %v580
        %v613 = vsel %vm542, %v440, %v581
        %v614 = vsel %vm543, %v443, %v582
        %v615 = vsel %vm544, %v448, %v583
        %v616 = vsel %vm545, %v451, %v584
        %v617 = vsel %vm546, %v456, %v585
        %v618 = vsel %vm547, %v459, %v586
        %v619 = vsel %vm548, %v464, %v587
        %v620 = vsel %vm549, %v467, %v588
        %v621 = vsel %vm550, %v472, %v589
        %v622 = vsel %vm551, %v475, %v590
        %v623 = vsel %vm552, %v480, %v591
        %v624 = vsel %vm553, %v483, %v592
        %v625 = vsel %vm554, %v488, %v593
        %v626 = vsel %vm555, %v491, %v594
        %v627 = vsel %vm556, %v496, %v595
        %v628 = vsel %vm557, %v499, %v596
        %v629 = vsel %vm558, %v504, %v597
        %v630 = vsel %vm559, %v507, %v598
        %v631 = vsel %vm560, %v512, %v599
        %v632 = vsel %vm561, %v515, %v600
        %v633 = vsel %vm562, %v520, %v601
        %v634 = vsel %vm563, %v523, %v602
        %v635 = vsel %vm564, %v528, %v603
        %v636 = vsel %vm565, %v531, %v604
        %v637 = vpack.c.bf16 %v606, %v605
        %v638 = vpack.c.bf16 %v608, %v607
        %v639 = vpack.c.bf16 %v610, %v609
        %v640 = vpack.c.bf16 %v612, %v611
        %v641 = vpack.c.bf16 %v614, %v613
        %v642 = vpack.c.bf16 %v616, %v615
        %v643 = vpack.c.bf16 %v618, %v617
        %v644 = vpack.c.bf16 %v620, %v619
        %v645 = vpack.c.bf16 %v622, %v621
        %v646 = vpack.c.bf16 %v624, %v623
        %v647 = vpack.c.bf16 %v626, %v625
        %v648 = vpack.c.bf16 %v628, %v627
        %v649 = vpack.c.bf16 %v630, %v629
        %v650 = vpack.c.bf16 %v632, %v631
        %v651 = vpack.c.bf16 %v634, %v633
        %v652 = vpack.c.bf16 %v636, %v635
        %v669 = vunpack.c.l.b16 %v637
        %v670 = vunpack.c.h.b16 %v637
        %v671 = vunpack.c.l.b16 %v638
        %v672 = vunpack.c.h.b16 %v638
        %v673 = vunpack.c.l.b16 %v639
        %v674 = vunpack.c.h.b16 %v639
        %v675 = vunpack.c.l.b16 %v640
        %v676 = vunpack.c.h.b16 %v640
        %v677 = vunpack.c.l.b16 %v641
        %v678 = vunpack.c.h.b16 %v641
        %v679 = vunpack.c.l.b16 %v642
        %v680 = vunpack.c.h.b16 %v642
        %v681 = vunpack.c.l.b16 %v643
        %v682 = vunpack.c.h.b16 %v643
        %v683 = vunpack.c.l.b16 %v644
        %v684 = vunpack.c.h.b16 %v644
        %v685 = vunpack.c.l.b16 %v645
        %v686 = vunpack.c.h.b16 %v645
        %v687 = vunpack.c.l.b16 %v646
        %v688 = vunpack.c.h.b16 %v646
        %v689 = vunpack.c.l.b16 %v647
        %v690 = vunpack.c.h.b16 %v647
        %v691 = vunpack.c.l.b16 %v648
        %v692 = vunpack.c.h.b16 %v648
        %v693 = vunpack.c.l.b16 %v649
        %v694 = vunpack.c.h.b16 %v649
        %v695 = vunpack.c.l.b16 %v650
        %v696 = vunpack.c.h.b16 %v650
        %v697 = vunpack.c.l.b16 %v651
        %v698 = vunpack.c.h.b16 %v651
        %v699 = vunpack.c.l.b16 %v652
        %v700 = vunpack.c.h.b16 %v652
        %v701 = vpack.c.b16 %v669, %v669
        %v702 = vpack.c.b16 %v670, %v670
        %v703 = vpack.c.b16 %v671, %v671
        %v704 = vpack.c.b16 %v672, %v672
        %v705 = vpack.c.b16 %v673, %v673
        %v706 = vpack.c.b16 %v674, %v674
        %v707 = vpack.c.b16 %v675, %v675
        %v708 = vpack.c.b16 %v676, %v676
        %v709 = vpack.c.b16 %v677, %v677
        %v710 = vpack.c.b16 %v678, %v678
        %v711 = vpack.c.b16 %v679, %v679
        %v712 = vpack.c.b16 %v680, %v680
        %v713 = vpack.c.b16 %v681, %v681
        %v714 = vpack.c.b16 %v682, %v682
        %v715 = vpack.c.b16 %v683, %v683
        %v716 = vpack.c.b16 %v684, %v684
        %v717 = vpack.c.b16 %v685, %v685
        %v718 = vpack.c.b16 %v686, %v686
        %v719 = vpack.c.b16 %v687, %v687
        %v720 = vpack.c.b16 %v688, %v688
        %v721 = vpack.c.b16 %v689, %v689
        %v722 = vpack.c.b16 %v690, %v690
        %v723 = vpack.c.b16 %v691, %v691
        %v724 = vpack.c.b16 %v692, %v692
        %v725 = vpack.c.b16 %v693, %v693
        %v726 = vpack.c.b16 %v694, %v694
        %v727 = vpack.c.b16 %v695, %v695
        %v728 = vpack.c.b16 %v696, %v696
        %v729 = vpack.c.b16 %v697, %v697
        %v730 = vpack.c.b16 %v698, %v698
        %v731 = vpack.c.b16 %v699, %v699
        %v732 = vpack.c.b16 %v700, %v700
        %765 = vst [vmem:[%s191] sm:$0xf] %v701
        %766 = vst [vmem:[%s191 + $0x4] sm:$0xf] %v702
        %767 = vst [vmem:[%s191 + $0x8] sm:$0xf] %v703
        %768 = vst [vmem:[%s191 + $0xc] sm:$0xf] %v704
        %769 = vst [vmem:[%s191 + $0x10] sm:$0xf] %v705
        %770 = vst [vmem:[%s191 + $0x14] sm:$0xf] %v706
        %771 = vst [vmem:[%s191 + $0x18] sm:$0xf] %v707
        %772 = vst [vmem:[%s191 + $0x1c] sm:$0xf] %v708
        %773 = vst [vmem:[%s191 + $0x20] sm:$0xf] %v709
        %774 = vst [vmem:[%s191 + $0x24] sm:$0xf] %v710
        %775 = vst [vmem:[%s191 + $0x28] sm:$0xf] %v711
        %776 = vst [vmem:[%s191 + $0x2c] sm:$0xf] %v712
        %777 = vst [vmem:[%s191 + $0x30] sm:$0xf] %v713
        %778 = vst [vmem:[%s191 + $0x34] sm:$0xf] %v714
        %779 = vst [vmem:[%s191 + $0x38] sm:$0xf] %v715
        %780 = vst [vmem:[%s191 + $0x3c] sm:$0xf] %v716
        %781 = vst [vmem:[%s191 + $0x40] sm:$0xf] %v717
        %782 = vst [vmem:[%s191 + $0x44] sm:$0xf] %v718
        %783 = vst [vmem:[%s191 + $0x48] sm:$0xf] %v719
        %784 = vst [vmem:[%s191 + $0x4c] sm:$0xf] %v720
        %785 = vst [vmem:[%s191 + $0x50] sm:$0xf] %v721
        %786 = vst [vmem:[%s191 + $0x54] sm:$0xf] %v722
        %787 = vst [vmem:[%s191 + $0x58] sm:$0xf] %v723
        %788 = vst [vmem:[%s191 + $0x5c] sm:$0xf] %v724
        %789 = vst [vmem:[%s191 + $0x60] sm:$0xf] %v725
        %790 = vst [vmem:[%s191 + $0x64] sm:$0xf] %v726
        %791 = vst [vmem:[%s191 + $0x68] sm:$0xf] %v727
        %792 = vst [vmem:[%s191 + $0x6c] sm:$0xf] %v728
        %793 = vst [vmem:[%s191 + $0x70] sm:$0xf] %v729
        %794 = vst [vmem:[%s191 + $0x74] sm:$0xf] %v730
        %795 = vst [vmem:[%s191 + $0x78] sm:$0xf] %v731
        %796 = vst [vmem:[%s191 + $0x7c] sm:$0xf] %v732
        %s797 = sand.u32 %s115, 1
        %s798 = scalar_lea.sflag [#allocation3], %s797
        %s799 = sand.u32 %s115, 1
        %s800 = smul.addr %s799, 128
        %s801 = scalar_lea.vmem [#allocation2], %s800
        // Predicated region
        $region37: #{tpu_custom_call.1} parent=35 // pred_check
          %p802 = pneg %p125
        $region38: #{tpu_custom_call.1} parent=35 // pred_check_branch
          %804 = sbr.rel (%p802) target = $region40
        $region39: #{tpu_custom_call.1} parent=35 // pred_region
          %s805 = smul.u32 32, %s18
          %s807 = ssub.s32 2048, 2048
          %808 = vsyncadd %s798, %s807
          %s809 = smul.addr %s805, 64
          %s810 = scalar_lea.hbm %s4, %s809
          %s811 = sshll.u32 %s801, 4
          %s812 = int_to_ptr.vmem [resolvable:$true] %s811
          %817 = dma.vmem_to_hbm [thread:$0]  %s812, 2048, %s810, %s798, 64, 64, 4
        $region40: #{tpu_custom_call.1} parent=35 // pred_fallthru
          _
      $region36: #{tpu_custom_call.1} parent=5 // pred_fallthru
        _
      %p818 = scmp.le.s32.totalorder 2, %s13
      // Predicated region
      $region41: #{tpu_custom_call.1} parent=5 // pred_check
        %p819 = pneg %p818
      $region42: #{tpu_custom_call.1} parent=5 // pred_check_branch
        %821 = sbr.rel (%p819) target = $region44
      $region43: #{tpu_custom_call.1} parent=5 // pred_region
        %s822 = ssub.s32 %s13, 2
        // Predicated region
        $region45: #{tpu_custom_call.1} parent=43 // pred_check
          %p823 = pneg %p131
        $region46: #{tpu_custom_call.1} parent=43 // pred_check_branch
          %825 = sbr.rel (%p823) target = $region48
        $region47: #{tpu_custom_call.1} parent=43 // pred_region
          %s826 = sand.u32 %s116, 1
          %s827 = scalar_lea.sflag [#allocation3], %s826
          %s828 = sand.u32 %s116, 1
          %s829 = smul.addr %s828, 128
          %s830 = scalar_lea.vmem [#allocation2], %s829
          %831 = dma.done %s827, 2048
        $region48: #{tpu_custom_call.1} parent=43 // pred_fallthru
          _
      $region44: #{tpu_custom_call.1} parent=5 // pred_fallthru
        _
    $region6: #{tpu_custom_call.1} parent=1 // loop_footer
      %s17 = sadd.s32 1, %s13
    $region7: #{tpu_custom_call.1} parent=1 // loop_footer_branch
      %12 = sbr.rel target = $region3
    $region8: #{tpu_custom_call.1} parent=1 // loop_exit
      _
    %832 = vsyncpa [#allocation3], 1
    %s833 = scalar_lea.sflag [#allocation3], 1
    %834 = vsyncpa %s833, 1

</llo_original>
